<compile_context>
chip_gen: v7x
topology: tpu7x:2x2x1
jax: 0.10.0
libtpu: 0.0.40
codegen_flags: <defaults>
</compile_context>

<pallas_src>
import jax
import jax.numpy as jnp
from jax import lax
from jax.experimental import pallas as pl
from jax.experimental.pallas import tpu as pltpu

EPS = 1e-5  # nn.LayerNorm default eps


# --------------------------- in-kernel helpers -------------------------------

def _conv_lhs(img_flat, W, C):
    """Build the banded-conv LHS for a 3x3 'SAME' conv.

    img_flat: (H, W*C) lane-flattened NHWC image (one sample).
    Returns (H, 3*(W+2)*C): three row-shifted copies of the zero-haloed image,
    concatenated along the lane axis (kh = 0, 1, 2 segments).
    """
    H = img_flat.shape[0]
    zc = jnp.zeros((H, C), img_flat.dtype)
    rows = jnp.concatenate([zc, img_flat, zc], axis=1)            # (H, (W+2)*C)
    zr = jnp.zeros((1, (W + 2) * C), img_flat.dtype)
    padded = jnp.concatenate([zr, rows, zr], axis=0)              # (H+2, (W+2)*C)
    return jnp.concatenate(
        [padded[0:H], padded[1:H + 1], padded[2:H + 2]], axis=1)  # (H, 3*(W+2)*C)


def make_unet_block_kernel(H, W, Cin, Cout):
    def kernel(x_ref, g_ref, beta_ref, w1_ref, b1_ref, w2_ref, b2_ref, o_ref):
        # x_ref:    (1, H, W*Cin)  original (pre-LN) input slab
        # g/beta:   (H, W*Cin)     LayerNorm affine, lane-flattened
        # w1_ref:   (3*(W+2)*Cin, W*Cout)   banded conv1 weight
        # b1_ref:   (1, W*Cout)             conv1 bias tiled over W
        # w2_ref:   (3*(W+2)*Cout + W*Cin, W*Cout)  banded conv2 + blockdiag 1x1
        # b2_ref:   (1, W*Cout)             conv2 bias + residual bias, tiled
        # o_ref:    (1, H, W*Cout)
        x = x_ref[0]                                         # (H, W*Cin)

        # ---- LayerNorm over the full (C,H,W) sample (biased var) + affine ----
        mean = jnp.mean(x)
        var = jnp.mean((x - mean) ** 2)
        xn = (x - mean) * lax.rsqrt(var + EPS) * g_ref[...] + beta_ref[...]

        # ---- conv1 (3x3, pad 1) as a single banded matmul, then ReLU ----
        h1 = jnp.dot(_conv_lhs(xn, W, Cin), w1_ref[...],
                     preferred_element_type=jnp.float32) + b1_ref[...]
        h1 = jnp.maximum(h1, 0.0)                            # (H, W*Cout)

        # ---- conv2 (3x3) + 1x1 residual on original x, fused into one matmul ----
        lhs2 = jnp.concatenate([_conv_lhs(h1, W, Cout), x], axis=1)
        out = jnp.dot(lhs2, w2_ref[...],
                      preferred_element_type=jnp.float32) + b2_ref[...]
        o_ref[0] = jnp.maximum(out, 0.0).astype(o_ref.dtype)  # (H, W*Cout)

    return kernel


# --------------------------- weight folding (plain JAX glue) ------------------

def _banded_conv_weight(w_hwio, W):
    """(3,3,Cin,Cout) HWIO 'SAME' 3x3 conv -> (3*(W+2)*Cin, W*Cout) banded matrix
    acting on the lane-flattened, zero-haloed LHS built in-kernel."""
    KH, KW, Cin, Cout = w_hwio.shape
    Wp = W + 2
    wi = jnp.arange(Wp)[:, None, None, None]       # padded input column
    wo = jnp.arange(W)[None, None, :, None]        # output column
    segs = []
    for kh in range(KH):
        a = jnp.zeros((Wp, Cin, W, Cout), w_hwio.dtype)
        for kw in range(KW):
            sel = (wi == wo + kw).astype(w_hwio.dtype)
            a = a + sel * w_hwio[kh, kw][None, :, None, :]
        segs.append(a.reshape(Wp * Cin, W * Cout))
    return jnp.concatenate(segs, axis=0)


def _blockdiag_weight(wr_io, W):
    """1x1 conv weight (Cin, Cout) -> block-diagonal (W*Cin, W*Cout)."""
    Cin, Cout = wr_io.shape
    eye = jnp.eye(W, dtype=wr_io.dtype)
    bd = eye[:, None, :, None] * wr_io[None, :, None, :]
    return bd.reshape(W * Cin, W * Cout)


# --------------------------- wrapper ------------------------------------------

def unet_block_forward(x_nchw, params):
    """UnetBlock(residual=True) forward.  x is NCHW; params use PyTorch layouts."""
    N, Cin, H, W = x_nchw.shape
    Cout = params["b1"].shape[0]
    WCin, WCout = W * Cin, W * Cout

    # NCHW -> lane-flattened NHWC slab (N, H, W*Cin)
    x_flat = jnp.transpose(x_nchw, (0, 2, 3, 1)).reshape(N, H, WCin).astype(jnp.float32)

    # Fold PyTorch-layout parameters into matmul-friendly operands.
    g_flat = jnp.transpose(params["ln_g"], (1, 2, 0)).reshape(H, WCin)    # (C,H,W)->(H,W*C)
    beta_flat = jnp.transpose(params["ln_b"], (1, 2, 0)).reshape(H, WCin)

    w1_hwio = jnp.transpose(params["w1"], (2, 3, 1, 0)).astype(jnp.float32)   # OIHW->HWIO
    w2_hwio = jnp.transpose(params["w2"], (2, 3, 1, 0)).astype(jnp.float32)
    wr_io = jnp.transpose(params["wr"][:, :, 0, 0], (1, 0)).astype(jnp.float32)

    w1_banded = _banded_conv_weight(w1_hwio, W)                        # (3*(W+2)*Cin, W*Cout)
    w2_comb = jnp.concatenate(
        [_banded_conv_weight(w2_hwio, W), _blockdiag_weight(wr_io, W)], axis=0)

    b1_flat = jnp.tile(params["b1"].astype(jnp.float32), W).reshape(1, WCout)
    b2_flat = jnp.tile((params["b2"] + params["br"]).astype(jnp.float32), W).reshape(1, WCout)

    K1 = 3 * (W + 2) * Cin
    K2 = 3 * (W + 2) * Cout + WCin

    out_flat = pl.pallas_call(
        make_unet_block_kernel(H, W, Cin, Cout),
        out_shape=jax.ShapeDtypeStruct((N, H, WCout), jnp.float32),
        grid_spec=pltpu.PrefetchScalarGridSpec(
            num_scalar_prefetch=0,
            grid=(N,),
            in_specs=[
                pl.BlockSpec((1, H, WCin), lambda n: (n, 0, 0)),   # x (per sample)
                pl.BlockSpec((H, WCin), lambda n: (0, 0)),         # LN gamma
                pl.BlockSpec((H, WCin), lambda n: (0, 0)),         # LN beta
                pl.BlockSpec((K1, WCout), lambda n: (0, 0)),       # conv1 banded weight
                pl.BlockSpec((1, WCout), lambda n: (0, 0)),        # conv1 bias (tiled)
                pl.BlockSpec((K2, WCout), lambda n: (0, 0)),       # conv2 + residual weight
                pl.BlockSpec((1, WCout), lambda n: (0, 0)),        # conv2 + residual bias
            ],
            out_specs=pl.BlockSpec((1, H, WCout), lambda n: (n, 0, 0)),
        ),
        compiler_params=pltpu.CompilerParams(
            dimension_semantics=("parallel",)),                     # batch over TCs on v7x
    )(x_flat, g_flat, beta_flat, w1_banded, b1_flat, w2_comb, b2_flat)

    # lane-flattened (N, H, W*Cout) -> NCHW
    return jnp.transpose(out_flat.reshape(N, H, W, Cout), (0, 3, 1, 2))


# --------------------------- pure-JAX reference -------------------------------

def unet_block_ref(x_nchw, params):
    x = jnp.transpose(x_nchw, (0, 2, 3, 1)).astype(jnp.float32)          # NHWC
    mean = jnp.mean(x, axis=(1, 2, 3), keepdims=True)
    var = jnp.mean((x - mean) ** 2, axis=(1, 2, 3), keepdims=True)
    g = jnp.transpose(params["ln_g"], (1, 2, 0))[None]
    b = jnp.transpose(params["ln_b"], (1, 2, 0))[None]
    out = (x - mean) * lax.rsqrt(var + EPS) * g + b

    w1 = jnp.transpose(params["w1"], (2, 3, 1, 0))
    w2 = jnp.transpose(params["w2"], (2, 3, 1, 0))
    out = jax.nn.relu(lax.conv_general_dilated(
        out, w1, (1, 1), "SAME", dimension_numbers=("NHWC", "HWIO", "NHWC"))
        + params["b1"][None, None, None, :])
    out = lax.conv_general_dilated(
        out, w2, (1, 1), "SAME", dimension_numbers=("NHWC", "HWIO", "NHWC")) \
        + params["b2"][None, None, None, :]

    wr = jnp.transpose(params["wr"][:, :, 0, 0], (1, 0))                 # (Cin, Cout)
    res = jnp.einsum("nhwi,io->nhwo", x, wr) + params["br"][None, None, None, :]
    out = jax.nn.relu(out + res)
    return jnp.transpose(out, (0, 3, 1, 2))


# --------------------------- main ---------------------------------------------

if __name__ == "__main__":
    N, C_in, C_out, H, W = 2, 4, 8, 16, 16

    key = jax.random.PRNGKey(0)
    keys = jax.random.split(key, 8)

    # Parameters in genuine PyTorch layouts.
    params = {
        "ln_g": 1.0 + 0.1 * jax.random.normal(keys[0], (C_in, H, W), jnp.float32),
        "ln_b": 0.1 * jax.random.normal(keys[1], (C_in, H, W), jnp.float32),
        "w1": 0.1 * jax.random.normal(keys[2], (C_out, C_in, 3, 3), jnp.float32),
        "b1": 0.1 * jax.random.normal(keys[3], (C_out,), jnp.float32),
        "w2": 0.1 * jax.random.normal(keys[4], (C_out, C_out, 3, 3), jnp.float32),
        "b2": 0.1 * jax.random.normal(keys[5], (C_out,), jnp.float32),
        "wr": 0.1 * jax.random.normal(keys[6], (C_out, C_in, 1, 1), jnp.float32),
        "br": 0.1 * jax.random.normal(keys[7], (C_out,), jnp.float32),
    }

    x = jax.random.normal(jax.random.PRNGKey(42), (N, C_in, H, W), jnp.float32)

    fwd = jax.jit(unet_block_forward)
    y = jax.block_until_ready(fwd(x, params))
    y_ref = jax.block_until_ready(unet_block_ref(x, params))

    assert y.shape == (N, C_out, H, W), y.shape
    assert jnp.allclose(y, y_ref, atol=1e-4, rtol=1e-4), \
        f"max abs err {jnp.max(jnp.abs(y - y_ref))}"

    print("KERNEL_OK")
</pallas_src>

<mosaic_0001>
module attributes {stable_mosaic.version = 11 : i64} {
  func.func @kernel(%arg0: i32, %arg1: memref<1x16x64xf32, #tpu.memory_space<vmem>>, %arg2: memref<16x64xf32, #tpu.memory_space<vmem>>, %arg3: memref<16x64xf32, #tpu.memory_space<vmem>>, %arg4: memref<216x128xf32, #tpu.memory_space<vmem>>, %arg5: memref<1x128xf32, #tpu.memory_space<vmem>>, %arg6: memref<496x128xf32, #tpu.memory_space<vmem>>, %arg7: memref<1x128xf32, #tpu.memory_space<vmem>>, %arg8: memref<1x16x128xf32, #tpu.memory_space<vmem>>) attributes {dimension_semantics = [#tpu.dimension_semantics<parallel>], iteration_bounds = array<i64: 2>, scalar_prefetch = 0 : i64, scratch_operands = 0 : i64, tpu.core_type = #tpu.core_type<tc>, window_params = [{transform_indices = @transform_0, window_bounds = array<i64: 1, 16, 64>}, {pipeline_mode = #tpu.pipeline_mode<synchronous>, transform_indices = @transform_1, window_bounds = array<i64: 16, 64>}, {pipeline_mode = #tpu.pipeline_mode<synchronous>, transform_indices = @transform_2, window_bounds = array<i64: 16, 64>}, {pipeline_mode = #tpu.pipeline_mode<synchronous>, transform_indices = @transform_3, window_bounds = array<i64: 216, 128>}, {pipeline_mode = #tpu.pipeline_mode<synchronous>, transform_indices = @transform_4, window_bounds = array<i64: 1, 128>}, {pipeline_mode = #tpu.pipeline_mode<synchronous>, transform_indices = @transform_5, window_bounds = array<i64: 496, 128>}, {pipeline_mode = #tpu.pipeline_mode<synchronous>, transform_indices = @transform_6, window_bounds = array<i64: 1, 128>}, {transform_indices = @transform_7, window_bounds = array<i64: 1, 16, 128>}]} {
    %c0 = arith.constant 0 : index
    %c0_0 = arith.constant 0 : index
    %c0_1 = arith.constant 0 : index
    %0 = vector.load %arg1[%c0, %c0_0, %c0_1] : memref<1x16x64xf32, #tpu.memory_space<vmem>>, vector<1x16x64xf32>
    %1 = vector.shape_cast %0 : vector<1x16x64xf32> to vector<16x64xf32>
    %2 = vector.shape_cast %1 : vector<16x64xf32> to vector<1x16x64xf32>
    %cst = arith.constant dense<0.000000e+00> : vector<1xf32>
    %3 = vector.multi_reduction <add>, %2, %cst [1, 2] : vector<1x16x64xf32> to vector<1xf32>
    %4 = vector.shape_cast %3 : vector<1xf32> to vector<1x1x1xf32>
    %5 = vector.extract %4[0, 0, 0] : f32 from vector<1x1x1xf32>
    %cst_2 = arith.constant 1.024000e+03 : f32
    %6 = arith.divf %5, %cst_2 : f32
    %7 = vector.broadcast %6 : f32 to vector<16x64xf32>
    %8 = arith.subf %1, %7 : vector<16x64xf32>
    %9 = arith.mulf %8, %8 : vector<16x64xf32>
    %10 = vector.shape_cast %9 : vector<16x64xf32> to vector<1x16x64xf32>
    %cst_3 = arith.constant dense<0.000000e+00> : vector<1xf32>
    %11 = vector.multi_reduction <add>, %10, %cst_3 [1, 2] : vector<1x16x64xf32> to vector<1xf32>
    %12 = vector.shape_cast %11 : vector<1xf32> to vector<1x1x1xf32>
    %13 = vector.extract %12[0, 0, 0] : f32 from vector<1x1x1xf32>
    %cst_4 = arith.constant 1.024000e+03 : f32
    %14 = arith.divf %13, %cst_4 : f32
    %15 = vector.broadcast %6 : f32 to vector<16x64xf32>
    %16 = arith.subf %1, %15 : vector<16x64xf32>
    %cst_5 = arith.constant 9.99999974E-6 : f32
    %17 = arith.addf %14, %cst_5 : f32
    %18 = math.rsqrt %17 : f32
    %19 = vector.broadcast %18 : f32 to vector<16x64xf32>
    %20 = arith.mulf %16, %19 : vector<16x64xf32>
    %c0_6 = arith.constant 0 : index
    %c0_7 = arith.constant 0 : index
    %21 = vector.load %arg2[%c0_6, %c0_7] : memref<16x64xf32, #tpu.memory_space<vmem>>, vector<16x64xf32>
    %22 = arith.mulf %20, %21 : vector<16x64xf32>
    %c0_8 = arith.constant 0 : index
    %c0_9 = arith.constant 0 : index
    %23 = vector.load %arg3[%c0_8, %c0_9] : memref<16x64xf32, #tpu.memory_space<vmem>>, vector<16x64xf32>
    %24 = arith.addf %22, %23 : vector<16x64xf32>
    %cst_10 = arith.constant 0.000000e+00 : f32
    %25 = vector.broadcast %cst_10 : f32 to vector<16x4xf32>
    %26 = tpu.concatenate %25, %24, %25 in 1 : vector<16x4xf32>, vector<16x64xf32>, vector<16x4xf32> -> vector<16x72xf32>
    %cst_11 = arith.constant 0.000000e+00 : f32
    %27 = vector.broadcast %cst_11 : f32 to vector<1x72xf32>
    %28 = tpu.concatenate %27, %26, %27 in 0 : vector<1x72xf32>, vector<16x72xf32>, vector<1x72xf32> -> vector<18x72xf32>
    %29 = vector.extract_strided_slice %28 {offsets = [0, 0], sizes = [16, 72], strides = [1, 1]} : vector<18x72xf32> to vector<16x72xf32>
    %30 = vector.extract_strided_slice %28 {offsets = [1, 0], sizes = [16, 72], strides = [1, 1]} : vector<18x72xf32> to vector<16x72xf32>
    %31 = vector.extract_strided_slice %28 {offsets = [2, 0], sizes = [16, 72], strides = [1, 1]} : vector<18x72xf32> to vector<16x72xf32>
    %32 = tpu.concatenate %29, %30, %31 in 1 : vector<16x72xf32>, vector<16x72xf32>, vector<16x72xf32> -> vector<16x216xf32>
    %c0_12 = arith.constant 0 : index
    %c0_13 = arith.constant 0 : index
    %33 = vector.load %arg4[%c0_12, %c0_13] : memref<216x128xf32, #tpu.memory_space<vmem>>, vector<216x128xf32>
    %cst_14 = arith.constant dense<0.000000e+00> : vector<16x128xf32>
    %34 = tpu.matmul %32, %33, %cst_14 {dimension_numbers = #tpu.dot_dimension_numbers<[1], [0], [0], [1], [0, 0, 1, 1], [], []>} : vector<16x216xf32>, vector<216x128xf32>, vector<16x128xf32> -> vector<16x128xf32>
    %c0_15 = arith.constant 0 : index
    %c0_16 = arith.constant 0 : index
    %35 = vector.load %arg5[%c0_15, %c0_16] : memref<1x128xf32, #tpu.memory_space<vmem>>, vector<1x128xf32>
    %36 = vector.broadcast %35 : vector<1x128xf32> to vector<16x128xf32>
    %37 = arith.addf %34, %36 : vector<16x128xf32>
    %cst_17 = arith.constant 0.000000e+00 : f32
    %38 = vector.broadcast %cst_17 : f32 to vector<16x128xf32>
    %39 = arith.maximumf %37, %38 : vector<16x128xf32>
    %cst_18 = arith.constant 0.000000e+00 : f32
    %40 = vector.broadcast %cst_18 : f32 to vector<16x8xf32>
    %41 = tpu.concatenate %40, %39, %40 in 1 : vector<16x8xf32>, vector<16x128xf32>, vector<16x8xf32> -> vector<16x144xf32>
    %cst_19 = arith.constant 0.000000e+00 : f32
    %42 = vector.broadcast %cst_19 : f32 to vector<1x144xf32>
    %43 = tpu.concatenate %42, %41, %42 in 0 : vector<1x144xf32>, vector<16x144xf32>, vector<1x144xf32> -> vector<18x144xf32>
    %44 = vector.extract_strided_slice %43 {offsets = [0, 0], sizes = [16, 144], strides = [1, 1]} : vector<18x144xf32> to vector<16x144xf32>
    %45 = vector.extract_strided_slice %43 {offsets = [1, 0], sizes = [16, 144], strides = [1, 1]} : vector<18x144xf32> to vector<16x144xf32>
    %46 = vector.extract_strided_slice %43 {offsets = [2, 0], sizes = [16, 144], strides = [1, 1]} : vector<18x144xf32> to vector<16x144xf32>
    %47 = tpu.concatenate %44, %45, %46 in 1 : vector<16x144xf32>, vector<16x144xf32>, vector<16x144xf32> -> vector<16x432xf32>
    %48 = tpu.concatenate %47, %1 in 1 : vector<16x432xf32>, vector<16x64xf32> -> vector<16x496xf32>
    %c0_20 = arith.constant 0 : index
    %c0_21 = arith.constant 0 : index
    %49 = vector.load %arg6[%c0_20, %c0_21] : memref<496x128xf32, #tpu.memory_space<vmem>>, vector<496x128xf32>
    %cst_22 = arith.constant dense<0.000000e+00> : vector<16x128xf32>
    %50 = tpu.matmul %48, %49, %cst_22 {dimension_numbers = #tpu.dot_dimension_numbers<[1], [0], [0], [1], [0, 0, 1, 1], [], []>} : vector<16x496xf32>, vector<496x128xf32>, vector<16x128xf32> -> vector<16x128xf32>
    %c0_23 = arith.constant 0 : index
    %c0_24 = arith.constant 0 : index
    %51 = vector.load %arg7[%c0_23, %c0_24] : memref<1x128xf32, #tpu.memory_space<vmem>>, vector<1x128xf32>
    %52 = vector.broadcast %51 : vector<1x128xf32> to vector<16x128xf32>
    %53 = arith.addf %50, %52 : vector<16x128xf32>
    %cst_25 = arith.constant 0.000000e+00 : f32
    %54 = vector.broadcast %cst_25 : f32 to vector<16x128xf32>
    %55 = arith.maximumf %53, %54 : vector<16x128xf32>
    %c0_26 = arith.constant 0 : index
    %c0_27 = arith.constant 0 : index
    %c0_28 = arith.constant 0 : index
    %56 = vector.load %arg8[%c0_26, %c0_27, %c0_28] : memref<1x16x128xf32, #tpu.memory_space<vmem>>, vector<1x16x128xf32>
    %57 = vector.shape_cast %56 : vector<1x16x128xf32> to vector<16x128xf32>
    %58 = vector.shape_cast %55 : vector<16x128xf32> to vector<1x16x128xf32>
    tpu.vector_store %arg8[%c0_26, %c0_27, %c0_28], %58 {strides = array<i32>} : memref<1x16x128xf32, #tpu.memory_space<vmem>>, vector<1x16x128xf32>,
    return
  }
  func.func @transform_0(%arg0: i32) -> (i32, i32, i32) {
    %c0_i32 = arith.constant 0 : i32
    %c0_i32_0 = arith.constant 0 : i32
    %c0_i32_1 = arith.constant 0 : i32
    return %arg0, %c0_i32, %c0_i32_0 : i32, i32, i32
  }
  func.func @transform_1(%arg0: i32) -> (i32, i32) {
    %c0_i32 = arith.constant 0 : i32
    %c0_i32_0 = arith.constant 0 : i32
    %c0_i32_1 = arith.constant 0 : i32
    return %c0_i32, %c0_i32_0 : i32, i32
  }
  func.func @transform_2(%arg0: i32) -> (i32, i32) {
    %c0_i32 = arith.constant 0 : i32
    %c0_i32_0 = arith.constant 0 : i32
    %c0_i32_1 = arith.constant 0 : i32
    return %c0_i32, %c0_i32_0 : i32, i32
  }
  func.func @transform_3(%arg0: i32) -> (i32, i32) {
    %c0_i32 = arith.constant 0 : i32
    %c0_i32_0 = arith.constant 0 : i32
    %c0_i32_1 = arith.constant 0 : i32
    return %c0_i32, %c0_i32_0 : i32, i32
  }
  func.func @transform_4(%arg0: i32) -> (i32, i32) {
    %c0_i32 = arith.constant 0 : i32
    %c0_i32_0 = arith.constant 0 : i32
    %c0_i32_1 = arith.constant 0 : i32
    return %c0_i32, %c0_i32_0 : i32, i32
  }
  func.func @transform_5(%arg0: i32) -> (i32, i32) {
    %c0_i32 = arith.constant 0 : i32
    %c0_i32_0 = arith.constant 0 : i32
    %c0_i32_1 = arith.constant 0 : i32
    return %c0_i32, %c0_i32_0 : i32, i32
  }
  func.func @transform_6(%arg0: i32) -> (i32, i32) {
    %c0_i32 = arith.constant 0 : i32
    %c0_i32_0 = arith.constant 0 : i32
    %c0_i32_1 = arith.constant 0 : i32
    return %c0_i32, %c0_i32_0 : i32, i32
  }
  func.func @transform_7(%arg0: i32) -> (i32, i32, i32) {
    %c0_i32 = arith.constant 0 : i32
    %c0_i32_0 = arith.constant 0 : i32
    %c0_i32_1 = arith.constant 0 : i32
    return %arg0, %c0_i32, %c0_i32_0 : i32, i32, i32
  }
}

</mosaic_0001>

<llo_original>
// kernel: tile.19
$region0: #{tile.19}
  %s0 = inlined_call_operand.vmem [shape: f32[16,8], index: 0, kind: input, shape index: {}]
  %s1 = inlined_call_operand.vmem [shape: f32[1,128], index: 1, kind: output, shape index: {}]
  $region1: #{tile.19} parent=0
    #allocation0 [shape = 'u8[4096]{0}', space=vmem, size = 0x1000, scoped, tag = 'scoped mem for output reshape']
    %v2 = vld [vmem:[%s0] sm:$0x1]
    %vm3 = vcmask 64512
    %4 = vst.msk [vmem:[#allocation0] sm:$0x1] %vm3, %v2
    %s5 = scalar_lea.vmem %s0, 15
    %v6 = vld [vmem:[%s5] sm:$0x1]
    %7 = vrot.lane.b32.xlu0 %v6, 120
    %v8 = vpop.permute.xlu0 %7
    %vm9 = vcmask 1048512
    %10 = vst.msk [vmem:[#allocation0] sm:$0x1] %vm9, %v8
    %s11 = scalar_lea.vmem %s0, 14
    %v12 = vld [vmem:[%s11] sm:$0x1]
    %13 = vrot.lane.b32.xlu0 %v12, 112
    %v14 = vpop.permute.xlu0 %13
    %vm15 = vcmask 982912
    %16 = vst.msk [vmem:[#allocation0] sm:$0x1] %vm15, %v14
    %s17 = scalar_lea.vmem %s0, 13
    %v18 = vld [vmem:[%s17] sm:$0x1]
    %19 = vrot.lane.b32.xlu0 %v18, 104
    %v20 = vpop.permute.xlu0 %19
    %vm21 = vcmask 917312
    %22 = vst.msk [vmem:[#allocation0] sm:$0x1] %vm21, %v20
    %s23 = scalar_lea.vmem %s0, 12
    %v24 = vld [vmem:[%s23] sm:$0x1]
    %25 = vrot.lane.b32.xlu0 %v24, 96
    %v26 = vpop.permute.xlu0 %25
    %vm27 = vcmask 851712
    %28 = vst.msk [vmem:[#allocation0] sm:$0x1] %vm27, %v26
    %s29 = scalar_lea.vmem %s0, 11
    %v30 = vld [vmem:[%s29] sm:$0x1]
    %31 = vrot.lane.b32.xlu0 %v30, 88
    %v32 = vpop.permute.xlu0 %31
    %vm33 = vcmask 786112
    %34 = vst.msk [vmem:[#allocation0] sm:$0x1] %vm33, %v32
    %s35 = scalar_lea.vmem %s0, 10
    %v36 = vld [vmem:[%s35] sm:$0x1]
    %37 = vrot.lane.b32.xlu0 %v36, 80
    %v38 = vpop.permute.xlu0 %37
    %vm39 = vcmask 720512
    %40 = vst.msk [vmem:[#allocation0] sm:$0x1] %vm39, %v38
    %s41 = scalar_lea.vmem %s0, 9
    %v42 = vld [vmem:[%s41] sm:$0x1]
    %43 = vrot.lane.b32.xlu0 %v42, 72
    %v44 = vpop.permute.xlu0 %43
    %vm45 = vcmask 654912
    %46 = vst.msk [vmem:[#allocation0] sm:$0x1] %vm45, %v44
    %s47 = scalar_lea.vmem %s0, 8
    %v48 = vld [vmem:[%s47] sm:$0x1]
    %49 = vrot.lane.b32.xlu0 %v48, 64
    %v50 = vpop.permute.xlu0 %49
    %vm51 = vcmask 589312
    %52 = vst.msk [vmem:[#allocation0] sm:$0x1] %vm51, %v50
    %s53 = scalar_lea.vmem %s0, 7
    %v54 = vld [vmem:[%s53] sm:$0x1]
    %55 = vrot.lane.b32.xlu0 %v54, 56
    %v56 = vpop.permute.xlu0 %55
    %vm57 = vcmask 523712
    %58 = vst.msk [vmem:[#allocation0] sm:$0x1] %vm57, %v56
    %s59 = scalar_lea.vmem %s0, 6
    %v60 = vld [vmem:[%s59] sm:$0x1]
    %61 = vrot.lane.b32.xlu0 %v60, 48
    %v62 = vpop.permute.xlu0 %61
    %vm63 = vcmask 458112
    %64 = vst.msk [vmem:[#allocation0] sm:$0x1] %vm63, %v62
    %s65 = scalar_lea.vmem %s0, 5
    %v66 = vld [vmem:[%s65] sm:$0x1]
    %67 = vrot.lane.b32.xlu0 %v66, 40
    %v68 = vpop.permute.xlu0 %67
    %vm69 = vcmask 392512
    %70 = vst.msk [vmem:[#allocation0] sm:$0x1] %vm69, %v68
    %s71 = scalar_lea.vmem %s0, 4
    %v72 = vld [vmem:[%s71] sm:$0x1]
    %73 = vrot.lane.b32.xlu0 %v72, 32
    %v74 = vpop.permute.xlu0 %73
    %vm75 = vcmask 326912
    %76 = vst.msk [vmem:[#allocation0] sm:$0x1] %vm75, %v74
    %s77 = scalar_lea.vmem %s0, 3
    %v78 = vld [vmem:[%s77] sm:$0x1]
    %79 = vrot.lane.b32.xlu0 %v78, 24
    %v80 = vpop.permute.xlu0 %79
    %vm81 = vcmask 261312
    %82 = vst.msk [vmem:[#allocation0] sm:$0x1] %vm81, %v80
    %s83 = scalar_lea.vmem %s0, 2
    %v84 = vld [vmem:[%s83] sm:$0x1]
    %85 = vrot.lane.b32.xlu0 %v84, 16
    %v86 = vpop.permute.xlu0 %85
    %vm87 = vcmask 195712
    %88 = vst.msk [vmem:[#allocation0] sm:$0x1] %vm87, %v86
    %s89 = scalar_lea.vmem %s0, 1
    %v90 = vld [vmem:[%s89] sm:$0x1]
    %91 = vrot.lane.b32.xlu0 %v90, 8
    %v92 = vpop.permute.xlu0 %91
    %vm93 = vcmask 130112
    %94 = vst.msk [vmem:[#allocation0] sm:$0x1] %vm93, %v92
    %s96 = sshllo.u32 0, 1
    %v98 = vld [vmem:[#allocation0] sm:%s96]
    %s99 = sshllo.u32 0, 1
    %100 = vst [vmem:[%s1] sm:%s99] %v98

// kernel: tile.18
$region0: #{tile.18}
  #allocation0 [shape = 's32[1]{0}', space=sflag, size = 0x4, scoped, tag = 'scoped memory for tile.18']
  %s0 = inlined_call_operand.vmem [shape: f32[8], index: 0, kind: input, shape index: {}]
  %s1 = inlined_call_operand.vmem [shape: f32[16,8], index: 1, kind: output, shape index: {}]
  // Predicated region
  $region2: #{tile.18} parent=0 // pred_check
    _
  $region3: #{tile.18} parent=0 // pred_check_branch
    %3 = sbr.rel (0) target = $region5
  $region4: #{tile.18} parent=0 // pred_region
    _
  $region5: #{tile.18} parent=0 // pred_fallthru
    _
  %v4 = vld [vmem:[%s0] ss:$0 sm:$0xff]
  %5 = vst [vmem:[%s1] sm:$0xff] %v4
  %s6 = scalar_lea.vmem %s1, 8
  %7 = vst [vmem:[%s6] sm:$0xff] %v4

// kernel: unet_block_forward.1
$region0: #{unet_block_forward.1}
  #allocation0 [shape = 'u32[]', space=smem, size = 0x4, offset = 0x4, fixed_abs, tag = 'smem constant byte address 0x4 - core index']
  #allocation1 [shape = 'u32[144,128]{1,0:T(1,128)}', space=vmem, size = 0x12000, scoped, tag = 'internal scratch']
  %s0 = inlined_call_operand.vmem [shape: f32[2,16,64], index: 0, kind: input, shape index: {}]
  %s1 = inlined_call_operand.vmem [shape: f32[16,64], index: 1, kind: input, shape index: {}]
  %s2 = inlined_call_operand.vmem [shape: f32[16,64], index: 2, kind: input, shape index: {}]
  %s3 = inlined_call_operand.vmem [shape: f32[216,128], index: 3, kind: input, shape index: {}]
  %s4 = inlined_call_operand.vmem [shape: f32[1,128], index: 4, kind: input, shape index: {}]
  %s5 = inlined_call_operand.vmem [shape: f32[496,128], index: 5, kind: input, shape index: {}]
  %s6 = inlined_call_operand.vmem [shape: f32[1,128], index: 6, kind: input, shape index: {}]
  %s7 = inlined_call_operand.vmem [shape: f32[2,16,128], index: 7, kind: output, shape index: {}]
  %s8 = sld [smem:[#allocation0]]
  $region61: #{unet_block_forward.1} parent=0
    _
  %s10 = ssub.s32 1, %s8
  %s11 = scalar_select 0, %s10, %s8
  loop: start=0, step=1, limit=4
  $region2: #{unet_block_forward.1} parent=0 // loop_pre_header
    _
  $region3: #{unet_block_forward.1} parent=0 // loop_header
    %s13 = sphi 0, %s17
    %p14 = scmp.ge.s32.totalorder %s13, 4
    %s23 = sphi 0, %s25
    %s26 = sphi 0, %s23
    %s27 = sphi 0, %s26
    %s43 = sphi 0, %s27
    %s47 = sphi 0, %s47
    %s49 = sphi 0, %s47
    %s50 = sphi 0, %s49
    %s64 = sphi 0, %s50
    %s68 = sphi 0, %s68
    %s70 = sphi 0, %s68
    %s71 = sphi 0, %s70
    %s85 = sphi 0, %s71
    %s89 = sphi 0, %s89
    %s91 = sphi 0, %s89
    %s92 = sphi 0, %s91
    %s106 = sphi 0, %s92
    %s110 = sphi 0, %s110
    %s112 = sphi 0, %s110
    %s113 = sphi 0, %s112
    %s127 = sphi 0, %s113
    %s131 = sphi 0, %s131
    %s133 = sphi 0, %s131
    %s134 = sphi 0, %s133
    %s148 = sphi 0, %s134
    %s152 = sphi 0, %s152
    %s154 = sphi 0, %s152
    %s155 = sphi 0, %s154
    %s169 = sphi 0, %s155
    %s175 = sphi 0, %s177
    %s178 = sphi 0, %s175
    %s179 = sphi 0, %s178
    %s195 = sphi 0, %s179
  $region4: #{unet_block_forward.1} parent=0 // loop_header_branch
    %16 = sbr.rel (%p14) target = $region8
  $region5: #{unet_block_forward.1} parent=0 // loop_body
    %s18 = ssub.s32 %s13, 1
    %s19 = ssub.s32 %s13, 2
    %s20 = sadd.s32 %s13, 1
    %s21 = ssub.s32 %s13, %s20
    %p22 = scmp.eq.s32.totalorder %s21, 0
    %s24 = sadd.s32 %s23, 1
    %s25 = scalar_select %p22, %s23, %s24
    %p28 = pneg %p22
    %p29 = scmp.eq.s32.totalorder %s13, 1
    %p30 = por %p28, %p29
    %p31 = scmp.ne.s32.totalorder %s23, %s26
    %p32 = scmp.eq.s32.totalorder %s13, 0
    %p33 = por %p31, %p32
    %p34 = scmp.ne.s32.totalorder %s23, %s26
    %p35 = scmp.eq.s32.totalorder %s18, 1
    %p36 = por %p34, %p35
    %p37 = scmp.ne.s32.totalorder %s26, %s27
    %p38 = scmp.eq.s32.totalorder %s18, 0
    %p39 = por %p37, %p38
    %p40 = scmp.ne.s32.totalorder %s26, %s27
    %p41 = scmp.eq.s32.totalorder %s19, 1
    %p42 = por %p40, %p41
    %p44 = scmp.ne.s32.totalorder %s27, %s43
    %p45 = scmp.eq.s32.totalorder %s19, 0
    %p46 = por %p44, %p45
    %s48 = sadd.s32 %s47, 1
    %p51 = scmp.eq.s32.totalorder %s13, 1
    %p52 = scmp.ne.s32.totalorder %s47, %s49
    %p53 = scmp.eq.s32.totalorder %s13, 0
    %p54 = por %p52, %p53
    %p55 = scmp.ne.s32.totalorder %s47, %s49
    %p56 = scmp.eq.s32.totalorder %s18, 1
    %p57 = por %p55, %p56
    %p58 = scmp.ne.s32.totalorder %s49, %s50
    %p59 = scmp.eq.s32.totalorder %s18, 0
    %p60 = por %p58, %p59
    %p61 = scmp.ne.s32.totalorder %s49, %s50
    %p62 = scmp.eq.s32.totalorder %s19, 1
    %p63 = por %p61, %p62
    %p65 = scmp.ne.s32.totalorder %s50, %s64
    %p66 = scmp.eq.s32.totalorder %s19, 0
    %p67 = por %p65, %p66
    %s69 = sadd.s32 %s68, 1
    %p72 = scmp.eq.s32.totalorder %s13, 1
    %p73 = scmp.ne.s32.totalorder %s68, %s70
    %p74 = scmp.eq.s32.totalorder %s13, 0
    %p75 = por %p73, %p74
    %p76 = scmp.ne.s32.totalorder %s68, %s70
    %p77 = scmp.eq.s32.totalorder %s18, 1
    %p78 = por %p76, %p77
    %p79 = scmp.ne.s32.totalorder %s70, %s71
    %p80 = scmp.eq.s32.totalorder %s18, 0
    %p81 = por %p79, %p80
    %p82 = scmp.ne.s32.totalorder %s70, %s71
    %p83 = scmp.eq.s32.totalorder %s19, 1
    %p84 = por %p82, %p83
    %p86 = scmp.ne.s32.totalorder %s71, %s85
    %p87 = scmp.eq.s32.totalorder %s19, 0
    %p88 = por %p86, %p87
    %s90 = sadd.s32 %s89, 1
    %p93 = scmp.eq.s32.totalorder %s13, 1
    %p94 = scmp.ne.s32.totalorder %s89, %s91
    %p95 = scmp.eq.s32.totalorder %s13, 0
    %p96 = por %p94, %p95
    %p97 = scmp.ne.s32.totalorder %s89, %s91
    %p98 = scmp.eq.s32.totalorder %s18, 1
    %p99 = por %p97, %p98
    %p100 = scmp.ne.s32.totalorder %s91, %s92
    %p101 = scmp.eq.s32.totalorder %s18, 0
    %p102 = por %p100, %p101
    %p103 = scmp.ne.s32.totalorder %s91, %s92
    %p104 = scmp.eq.s32.totalorder %s19, 1
    %p105 = por %p103, %p104
    %p107 = scmp.ne.s32.totalorder %s92, %s106
    %p108 = scmp.eq.s32.totalorder %s19, 0
    %p109 = por %p107, %p108
    %s111 = sadd.s32 %s110, 1
    %p114 = scmp.eq.s32.totalorder %s13, 1
    %p115 = scmp.ne.s32.totalorder %s110, %s112
    %p116 = scmp.eq.s32.totalorder %s13, 0
    %p117 = por %p115, %p116
    %p118 = scmp.ne.s32.totalorder %s110, %s112
    %p119 = scmp.eq.s32.totalorder %s18, 1
    %p120 = por %p118, %p119
    %p121 = scmp.ne.s32.totalorder %s112, %s113
    %p122 = scmp.eq.s32.totalorder %s18, 0
    %p123 = por %p121, %p122
    %p124 = scmp.ne.s32.totalorder %s112, %s113
    %p125 = scmp.eq.s32.totalorder %s19, 1
    %p126 = por %p124, %p125
    %p128 = scmp.ne.s32.totalorder %s113, %s127
    %p129 = scmp.eq.s32.totalorder %s19, 0
    %p130 = por %p128, %p129
    %s132 = sadd.s32 %s131, 1
    %p135 = scmp.eq.s32.totalorder %s13, 1
    %p136 = scmp.ne.s32.totalorder %s131, %s133
    %p137 = scmp.eq.s32.totalorder %s13, 0
    %p138 = por %p136, %p137
    %p139 = scmp.ne.s32.totalorder %s131, %s133
    %p140 = scmp.eq.s32.totalorder %s18, 1
    %p141 = por %p139, %p140
    %p142 = scmp.ne.s32.totalorder %s133, %s134
    %p143 = scmp.eq.s32.totalorder %s18, 0
    %p144 = por %p142, %p143
    %p145 = scmp.ne.s32.totalorder %s133, %s134
    %p146 = scmp.eq.s32.totalorder %s19, 1
    %p147 = por %p145, %p146
    %p149 = scmp.ne.s32.totalorder %s134, %s148
    %p150 = scmp.eq.s32.totalorder %s19, 0
    %p151 = por %p149, %p150
    %s153 = sadd.s32 %s152, 1
    %p156 = scmp.eq.s32.totalorder %s13, 1
    %p157 = scmp.ne.s32.totalorder %s152, %s154
    %p158 = scmp.eq.s32.totalorder %s13, 0
    %p159 = por %p157, %p158
    %p160 = scmp.ne.s32.totalorder %s152, %s154
    %p161 = scmp.eq.s32.totalorder %s18, 1
    %p162 = por %p160, %p161
    %p163 = scmp.ne.s32.totalorder %s154, %s155
    %p164 = scmp.eq.s32.totalorder %s18, 0
    %p165 = por %p163, %p164
    %p166 = scmp.ne.s32.totalorder %s154, %s155
    %p167 = scmp.eq.s32.totalorder %s19, 1
    %p168 = por %p166, %p167
    %p170 = scmp.ne.s32.totalorder %s155, %s169
    %p171 = scmp.eq.s32.totalorder %s19, 0
    %p172 = por %p170, %p171
    %s173 = ssub.s32 %s13, %s20
    %p174 = scmp.eq.s32.totalorder %s173, 0
    %s176 = sadd.s32 %s175, 1
    %s177 = scalar_select %p174, %s175, %s176
    %p180 = pneg %p174
    %p181 = scmp.eq.s32.totalorder %s13, 1
    %p182 = por %p180, %p181
    %p183 = scmp.ne.s32.totalorder %s175, %s178
    %p184 = scmp.eq.s32.totalorder %s13, 0
    %p185 = por %p183, %p184
    %p186 = scmp.ne.s32.totalorder %s175, %s178
    %p187 = scmp.eq.s32.totalorder %s18, 1
    %p188 = por %p186, %p187
    %p189 = scmp.ne.s32.totalorder %s178, %s179
    %p190 = scmp.eq.s32.totalorder %s18, 0
    %p191 = por %p189, %p190
    %p192 = scmp.ne.s32.totalorder %s178, %s179
    %p193 = scmp.eq.s32.totalorder %s19, 1
    %p194 = por %p192, %p193
    %p196 = scmp.ne.s32.totalorder %s179, %s195
    %p197 = scmp.eq.s32.totalorder %s19, 0
    %p198 = por %p196, %p197
    %p199 = scmp.le.s32.totalorder 1, %s13
    %p200 = scmp.lt.s32.totalorder %s13, 3
    %p201 = pnand %p199, %p200
    %p202 = pneg %p201
    // Predicated region
    $region9: #{unet_block_forward.1} parent=5 // pred_check
      _
    $region10: #{unet_block_forward.1} parent=5 // pred_check_branch
      %204 = sbr.rel (%p201) target = $region12
    $region11: #{unet_block_forward.1} parent=5 // pred_region
      %s205 = ssub.s32 %s13, 1
      // Predicated region
      $region13: #{unet_block_forward.1} parent=11 // pred_check
        %p206 = pneg %p60
      $region14: #{unet_block_forward.1} parent=11 // pred_check_branch
        %208 = sbr.rel (%p206) target = $region16
      $region15: #{unet_block_forward.1} parent=11 // pred_region
        _
      $region16: #{unet_block_forward.1} parent=11 // pred_fallthru
        _
      // Predicated region
      $region17: #{unet_block_forward.1} parent=11 // pred_check
        %p209 = pneg %p81
      $region18: #{unet_block_forward.1} parent=11 // pred_check_branch
        %211 = sbr.rel (%p209) target = $region20
      $region19: #{unet_block_forward.1} parent=11 // pred_region
        _
      $region20: #{unet_block_forward.1} parent=11 // pred_fallthru
        _
      // Predicated region
      $region21: #{unet_block_forward.1} parent=11 // pred_check
        %p212 = pneg %p102
      $region22: #{unet_block_forward.1} parent=11 // pred_check_branch
        %214 = sbr.rel (%p212) target = $region24
      $region23: #{unet_block_forward.1} parent=11 // pred_region
        _
      $region24: #{unet_block_forward.1} parent=11 // pred_fallthru
        _
      // Predicated region
      $region25: #{unet_block_forward.1} parent=11 // pred_check
        %p215 = pneg %p123
      $region26: #{unet_block_forward.1} parent=11 // pred_check_branch
        %217 = sbr.rel (%p215) target = $region28
      $region27: #{unet_block_forward.1} parent=11 // pred_region
        _
      $region28: #{unet_block_forward.1} parent=11 // pred_fallthru
        _
      // Predicated region
      $region29: #{unet_block_forward.1} parent=11 // pred_check
        %p218 = pneg %p144
      $region30: #{unet_block_forward.1} parent=11 // pred_check_branch
        %220 = sbr.rel (%p218) target = $region32
      $region31: #{unet_block_forward.1} parent=11 // pred_region
        _
      $region32: #{unet_block_forward.1} parent=11 // pred_fallthru
        _
      // Predicated region
      $region33: #{unet_block_forward.1} parent=11 // pred_check
        %p221 = pneg %p165
      $region34: #{unet_block_forward.1} parent=11 // pred_check_branch
        %223 = sbr.rel (%p221) target = $region36
      $region35: #{unet_block_forward.1} parent=11 // pred_region
        _
      $region36: #{unet_block_forward.1} parent=11 // pred_fallthru
        _
    $region12: #{unet_block_forward.1} parent=5 // pred_fallthru
      _
    %p224 = scmp.lt.s32.totalorder %s13, 2
    // Predicated region
    $region37: #{unet_block_forward.1} parent=5 // pred_check
      %p225 = pneg %p224
    $region38: #{unet_block_forward.1} parent=5 // pred_check_branch
      %227 = sbr.rel (%p225) target = $region40
    $region39: #{unet_block_forward.1} parent=5 // pred_region
      // Predicated region
      $region41: #{unet_block_forward.1} parent=39 // pred_check
        %p228 = pneg %p33
      $region42: #{unet_block_forward.1} parent=39 // pred_check_branch
        %230 = sbr.rel (%p228) target = $region44
      $region43: #{unet_block_forward.1} parent=39 // pred_region
        %p231 = scmp.lt.s32.totalorder %s13, 1
        %s232 = scalar_select %p231, %s13, 1
        %s233 = smul.addr %s232, 2
        %s234 = smul.addr %s233, 8
        %s235 = scalar_lea.vmem %s0, %s234
      $region44: #{unet_block_forward.1} parent=39 // pred_fallthru
        _
    $region40: #{unet_block_forward.1} parent=5 // pred_fallthru
      _
    %p236 = scmp.le.s32.totalorder 1, %s13
    %p237 = scmp.lt.s32.totalorder %s13, 3
    %p238 = pnand %p236, %p237
    %p239 = pneg %p238
    // Predicated region
    $region45: #{unet_block_forward.1} parent=5 // pred_check
      _
    $region46: #{unet_block_forward.1} parent=5 // pred_check_branch
      %241 = sbr.rel (%p238) target = $region48
    $region47: #{unet_block_forward.1} parent=5 // pred_region
      %s242 = ssub.s32 %s13, 1
      %p243 = scmp.lt.s32.totalorder %s18, 1
      %s244 = scalar_select %p243, %s18, 1
      %s245 = smul.addr %s244, 2
      %s246 = smul.addr %s245, 8
      %s247 = scalar_lea.vmem %s0, %s246
      %p248 = pneg %p39
      %p249 = pneg %p36
      %p250 = pneg %p60
      %p251 = pneg %p57
      %p252 = pneg %p81
      %p253 = pneg %p78
      %p254 = pneg %p102
      %p255 = pneg %p99
      %p256 = pneg %p123
      %p257 = pneg %p120
      %p258 = pneg %p144
      %p259 = pneg %p141
      %p260 = pneg %p165
      %p261 = pneg %p162
      %p262 = pneg %p191
      %p263 = pneg %p188
      %p264 = scmp.lt.s32.totalorder %s18, 1
      %s265 = scalar_select %p264, %s18, 1
      %s266 = smul.addr %s265, 2
      %s267 = smul.addr %s266, 8
      %s268 = scalar_lea.vmem %s7, %s267
      %p269 = scmp.lt.s32.totalorder %s18, 1
      %s270 = scalar_select %p269, %s18, 1
      %s271 = smul.addr %s270, 2
      %s272 = smul.addr %s271, 8
      %s273 = scalar_lea.vmem %s0, %s272
      %p274 = scmp.lt.s32.totalorder %s18, 1
      %s275 = scalar_select %p274, %s18, 1
      %s276 = smul.addr %s275, 2
      %s277 = smul.addr %s276, 8
      %s278 = scalar_lea.vmem %s7, %s277
      %v279 = vld [vmem:[%s273] sm:$0xff]
      %v280 = vld [vmem:[%s273 + $0x8] sm:$0xff]
      %vm281 = vcmask 523264
      %v282 = vsel %vm281, %v279, 0.0
      %v283 = vsel %vm281, %v280, 0.0
      %v284 = vadd.f32 %v282, %v283
      %285 = vadd.xlane.f32.xlu0 %v284
      %v286 = vpop.xlane.xlu0 %285
      %v287 = vrot.slane %v286, 4
      %v288 = vadd.f32 %v286, %v287
      %v289 = vrot.slane %v288, 2
      %v290 = vadd.f32 %v288, %v289
      %v291 = vrot.slane %v290, 1
      %v292 = vadd.f32 %v290, %v291
      %s293 = vtos %v292
      %v294 = vrcp.pop 1024.0
      %s295 = vtos %v294
      %s296 = smul.f32 %s293, %s295
      %v297 = vstv %s296
      %v298 = vsub.f32 %v279, %v297
      %v299 = vsub.f32 %v280, %v297
      %v300 = vmul.f32 %v298, %v298
      %v301 = vmul.f32 %v299, %v299
      %v302 = vsel %vm281, %v300, 0.0
      %v303 = vsel %vm281, %v301, 0.0
      %v304 = vadd.f32 %v302, %v303
      %305 = vadd.xlane.f32.xlu0 %v304
      %v306 = vpop.xlane.xlu0 %305
      %v307 = vrot.slane %v306, 4
      %v308 = vadd.f32 %v306, %v307
      %v309 = vrot.slane %v308, 2
      %v310 = vadd.f32 %v308, %v309
      %v311 = vrot.slane %v310, 1
      %v312 = vadd.f32 %v310, %v311
      %s313 = vtos %v312
      %v314 = vrcp.pop 1024.0
      %s315 = vtos %v314
      %s316 = smul.f32 %s313, %s315
      %s317 = sadd.f32 %s316, 1e-05
      %v318 = vstv %s317
      %v319 = vrsqrt.pop %v318
      %s320 = vtos %v319
      %v321 = vstv %s320
      %v322 = vmul.f32 %v298, %v321
      %v323 = vmul.f32 %v299, %v321
      %v324 = vld [vmem:[%s1] sm:$0xff]
      %v325 = vld [vmem:[%s1 + $0x8] sm:$0xff]
      %v326 = vmul.f32 %v322, %v324
      %v327 = vmul.f32 %v323, %v325
      %v328 = vld [vmem:[%s2] sm:$0xff]
      %v329 = vld [vmem:[%s2 + $0x8] sm:$0xff]
      %v330 = vadd.f32 %v326, %v328
      %v331 = vadd.f32 %v327, %v329
      %334 = vrot.lane.b32.xlu0 %v330, 4
      %v335 = vpop.permute.xlu0 %334
      %336 = vrot.lane.b32.xlu0 %v331, 4
      %v337 = vpop.permute.xlu0 %336
      %vm340 = vcmask 31744
      %v341 = vsel %vm340, 0.0, %v335
      %v342 = vsel %vm340, 0.0, %v337
      %vm343 = vcmask 556032
      %v344 = vsel %vm343, %v341, 0.0
      %v345 = vsel %vm343, %v342, 0.0
      %vm348 = vcmask 1040384
      %v349 = vrot.slane %v344, 7
      %v350 = vrot.slane %v345, 7
      %v351 = vsel %vm348, %v349, %v350
      %v355 = vsel %vm348, 0.0, %v349
      %v356 = vsel %vm348, %v350, 0.0
      %vm359 = vcmask 1046528
      %v360 = vrot.slane %v355, 1
      %v361 = vrot.slane %v351, 1
      %v362 = vsel %vm359, %v360, %v361
      %v363 = vrot.slane %v356, 1
      %v364 = vsel %vm359, %v361, %v363
      %365 = vrot.lane.b32.xlu0 %v362, 72
      %v366 = vpop.permute.xlu0 %365
      %367 = vrot.lane.b32.xlu0 %v364, 72
      %v368 = vpop.permute.xlu0 %367
      %vm371 = vcmask 1045504
      %v372 = vrot.slane %v355, 2
      %v373 = vrot.slane %v351, 2
      %v374 = vsel %vm371, %v372, %v373
      %v375 = vrot.slane %v356, 2
      %v376 = vsel %vm371, %v373, %v375
      %377 = vrot.lane.b32.xlu0 %v374, 16
      %v378 = vpop.permute.xlu0 %377
      %379 = vrot.lane.b32.xlu0 %v376, 16
      %v380 = vpop.permute.xlu0 %379
      %vm383 = vcmask 588800
      %v384 = vsel %vm383, %v355, %v366
      %v385 = vsel %vm383, %v351, %v368
      %vm386 = vcmask 130048
      %v387 = vsel %vm386, %v366, %v378
      %v388 = vsel %vm386, %v368, %v380
      %v389 = vld [vmem:[%s3] sm:$0xff]
      %v390 = vld [vmem:[%s3 + $0x8] sm:$0xff]
      %v391 = vld [vmem:[%s3 + $0x10] sm:$0xff]
      %v392 = vld [vmem:[%s3 + $0x18] sm:$0xff]
      %v393 = vld [vmem:[%s3 + $0x20] sm:$0xff]
      %v394 = vld [vmem:[%s3 + $0x28] sm:$0xff]
      %v395 = vld [vmem:[%s3 + $0x30] sm:$0xff]
      %v396 = vld [vmem:[%s3 + $0x38] sm:$0xff]
      %v397 = vld [vmem:[%s3 + $0x40] sm:$0xff]
      %v398 = vld [vmem:[%s3 + $0x48] sm:$0xff]
      %v399 = vld [vmem:[%s3 + $0x50] sm:$0xff]
      %v400 = vld [vmem:[%s3 + $0x58] sm:$0xff]
      %v401 = vld [vmem:[%s3 + $0x60] sm:$0xff]
      %v402 = vld [vmem:[%s3 + $0x68] sm:$0xff]
      %v403 = vld [vmem:[%s3 + $0x70] sm:$0xff]
      %v404 = vld [vmem:[%s3 + $0x78] sm:$0xff]
      %v405 = vld [vmem:[%s3 + $0x80] sm:$0xff]
      %v406 = vld [vmem:[%s3 + $0x88] sm:$0xff]
      %v407 = vld [vmem:[%s3 + $0x90] sm:$0xff]
      %v408 = vld [vmem:[%s3 + $0x98] sm:$0xff]
      %v409 = vld [vmem:[%s3 + $0xa0] sm:$0xff]
      %v410 = vld [vmem:[%s3 + $0xa8] sm:$0xff]
      %v411 = vld [vmem:[%s3 + $0xb0] sm:$0xff]
      %v412 = vld [vmem:[%s3 + $0xb8] sm:$0xff]
      %v413 = vld [vmem:[%s3 + $0xc0] sm:$0xff]
      %v414 = vld [vmem:[%s3 + $0xc8] sm:$0xff]
      %v415 = vld [vmem:[%s3 + $0xd0] sm:$0xff]
      %v416 = vld [vmem:[%s4] sm:$0x1]
      %v418 = vlaneseq
      %v419 = vshrl.u32 %v418, 7
      %v420 = vsub.s32 0, %v419
      %v421 = vrot.slane %v416, %v420
      %vm423 = vcmask 719872
      %v425 = vsel %vm423, %v387, 0
      %v428 = vsel %vm423, %v388, 0
      %430 = vmatprep.subr.mxu0 0.0
      %431 = vmatpush1.msra.mxu0 %v389
      %432 = vmatprep.subr.mxu0 0.0
      %433 = vmatpush1.msra.mxu0 %v390
      %434 = vmatprep.subr.mxu0 0.0
      %435 = vmatpush1.msra.mxu0 %v391
      %436 = vmatprep.subr.mxu0 0.0
      %437 = vmatpush1.msra.mxu0 %v392
      %438 = vmatprep.subr.mxu0 0.0
      %439 = vmatpush1.msra.mxu0 %v393
      %440 = vmatprep.subr.mxu0 0.0
      %441 = vmatpush1.msra.mxu0 %v394
      %442 = vmatprep.subr.mxu0 0.0
      %443 = vmatpush1.msra.mxu0 %v395
      %444 = vmatprep.subr.mxu0 0.0
      %445 = vmatpush1.msra.mxu0 %v396
      %446 = vmatprep.subr.mxu0 0.0
      %447 = vmatpush1.msra.mxu0 %v397
      %448 = vmatprep.subr.mxu0 0.0
      %449 = vmatpush1.msra.mxu0 %v398
      %450 = vmatprep.subr.mxu0 0.0
      %451 = vmatpush1.msra.mxu0 %v399
      %452 = vmatprep.subr.mxu0 0.0
      %453 = vmatpush1.msra.mxu0 %v400
      %454 = vmatprep.subr.mxu0 0.0
      %455 = vmatpush1.msra.mxu0 %v401
      %456 = vmatprep.subr.mxu0 0.0
      %457 = vmatpush1.msra.mxu0 %v402
      %458 = vmatprep.subr.mxu0 0.0
      %459 = vmatpush1.msra.mxu0 %v403
      %460 = vmatprep.subr.mxu0 0.0
      %461 = vmatpush1.msra.mxu0 %v404
      %462 = vmatprep.subr.mxu0 0.0
      %463 = vmatpush1.msra.mxu0 %v405
      %464 = vmatprep.subr.mxu0 0.0
      %465 = vmatpush1.msra.mxu0 %v406
      %466 = vmatprep.subr.mxu0 0.0
      %467 = vmatpush1.msra.mxu0 %v407
      %468 = vmatprep.subr.mxu0 0.0
      %469 = vmatpush1.msra.mxu0 %v408
      %470 = vmatprep.subr.mxu0 0.0
      %471 = vmatpush1.msra.mxu0 %v409
      %472 = vmatprep.subr.mxu0 0.0
      %473 = vmatpush1.msra.mxu0 %v410
      %474 = vmatprep.subr.mxu0 0.0
      %475 = vmatpush1.msra.mxu0 %v411
      %476 = vmatprep.subr.mxu0 0.0
      %477 = vmatpush1.msra.mxu0 %v412
      %478 = vmatprep.subr.mxu0 0.0
      %479 = vmatpush1.msra.mxu0 %v413
      %480 = vmatprep.subr.mxu0 0.0
      %481 = vmatpush1.msra.mxu0 %v414
      %482 = vmatprep.subr.mxu0 0.0
      %483 = vmatpush1.msra.mxu0 %v415
      %484 = vmatprep.subr.mxu0 0.0
      %485 = vmatpush1.msra.mxu0 0.0
      %486 = vmatprep.subr.mxu0 0.0
      %487 = vmatpush1.msra.mxu0 0.0
      %488 = vmatprep.subr.mxu0 0.0
      %489 = vmatpush1.msra.mxu0 0.0
      %490 = vmatprep.subr.mxu0 0.0
      %491 = vmatpush1.msra.mxu0 0.0
      %492 = vmatprep.subr.mxu0 0.0
      %493 = vmatpush1.msra.mxu0 0.0
      %494 = vmatprep.mubr.f32.mxu0 %v425
      %495 = vmatmul.mubr.f32.gmra.mrb[0].mxu0 %v384
      %v496 = vpop.f32.mrb[0].mxu0
      %v497 = vadd.f32 %v421, %v496
      %v498 = vpop.f32.mrb[0].mxu0
      %499 = vmatprep.mubr.f32.mxu0 %v428
      %500 = vmatmul.mubr.f32.gmra.mrb[0].mxu0 %v385
      %v501 = vpop.f32.mrb[0].mxu0
      %v502 = vadd.f32 %v421, %v501
      %v503 = vpop.f32.mrb[0].mxu0
      %504 = vdwg.mxu0
      %v505 = vmax.f32 %v497, 0.0
      %v506 = vmax.f32 %v502, 0.0
      %509 = vrot.lane.b32.xlu0 %v505, 8
      %v510 = vpop.permute.xlu0 %509
      %511 = vrot.lane.b32.xlu0 %v506, 8
      %v512 = vpop.permute.xlu0 %511
      %vm515 = vcmask 64512
      %v516 = vsel %vm515, 0.0, %v510
      %v517 = vsel %vm515, 0.0, %v512
      %v518 = vsel %vm515, %v510, 0.0
      %v519 = vsel %vm515, %v512, 0.0
      %v524 = vrot.slane %v516, 7
      %v525 = vrot.slane %v518, 7
      %v526 = vrot.slane %v517, 7
      %v527 = vsel %vm348, %v524, %v526
      %v528 = vrot.slane %v519, 7
      %v529 = vsel %vm348, %v525, %v528
      %v536 = vsel %vm348, 0.0, %v524
      %v537 = vsel %vm348, 0.0, %v525
      %v538 = vsel %vm348, %v526, 0.0
      %v539 = vsel %vm348, %v528, 0.0
      %v544 = vrot.slane %v536, 1
      %v545 = vrot.slane %v527, 1
      %v546 = vsel %vm359, %v544, %v545
      %v547 = vrot.slane %v537, 1
      %v548 = vrot.slane %v529, 1
      %v549 = vsel %vm359, %v547, %v548
      %v550 = vrot.slane %v538, 1
      %v551 = vsel %vm359, %v545, %v550
      %v552 = vrot.slane %v539, 1
      %v553 = vsel %vm359, %v548, %v552
      %554 = vrot.lane.b32.xlu0 %v546, 16
      %v555 = vpop.permute.xlu0 %554
      %556 = vrot.lane.b32.xlu0 %v549, 16
      %v557 = vpop.permute.xlu0 %556
      %558 = vrot.lane.b32.xlu0 %v551, 16
      %v559 = vpop.permute.xlu0 %558
      %560 = vrot.lane.b32.xlu0 %v553, 16
      %v561 = vpop.permute.xlu0 %560
      %v562 = vsel %vm386, %v555, %v557
      %v563 = vsel %vm386, %v559, %v561
      %v568 = vrot.slane %v536, 2
      %v569 = vrot.slane %v527, 2
      %v570 = vsel %vm371, %v568, %v569
      %v571 = vrot.slane %v537, 2
      %v572 = vrot.slane %v529, 2
      %v573 = vsel %vm371, %v571, %v572
      %v574 = vrot.slane %v538, 2
      %v575 = vsel %vm371, %v569, %v574
      %v576 = vrot.slane %v539, 2
      %v577 = vsel %vm371, %v572, %v576
      %578 = vrot.lane.b32.xlu0 %v570, 32
      %v579 = vpop.permute.xlu0 %578
      %580 = vrot.lane.b32.xlu0 %v573, 32
      %v581 = vpop.permute.xlu0 %580
      %582 = vrot.lane.b32.xlu0 %v575, 32
      %v583 = vpop.permute.xlu0 %582
      %584 = vrot.lane.b32.xlu0 %v577, 32
      %v585 = vpop.permute.xlu0 %584
      %vm586 = vcmask 261120
      %v587 = vsel %vm586, %v579, %v581
      %v588 = vsel %vm586, %v583, %v585
      %v593 = vsel %vm386, %v537, %v555
      %v594 = vsel %vm386, %v529, %v559
      %v595 = vsel %vm586, %v562, %v579
      %v596 = vsel %vm586, %v563, %v583
      %599 = vrot.lane.b32.xlu0 %v279, 48
      %v600 = vpop.permute.xlu0 %599
      %601 = vrot.lane.b32.xlu0 %v280, 48
      %v602 = vpop.permute.xlu0 %601
      %vm605 = vcmask 392192
      %v606 = vsel %vm605, %v587, %v600
      %v607 = vsel %vm605, %v588, %v602
      %v608 = vld [vmem:[%s5] sm:$0xff]
      %v609 = vld [vmem:[%s5 + $0x8] sm:$0xff]
      %v610 = vld [vmem:[%s5 + $0x10] sm:$0xff]
      %v611 = vld [vmem:[%s5 + $0x18] sm:$0xff]
      %v612 = vld [vmem:[%s5 + $0x20] sm:$0xff]
      %v613 = vld [vmem:[%s5 + $0x28] sm:$0xff]
      %v614 = vld [vmem:[%s5 + $0x30] sm:$0xff]
      %v615 = vld [vmem:[%s5 + $0x38] sm:$0xff]
      %v616 = vld [vmem:[%s5 + $0x40] sm:$0xff]
      %v617 = vld [vmem:[%s5 + $0x48] sm:$0xff]
      %v618 = vld [vmem:[%s5 + $0x50] sm:$0xff]
      %v619 = vld [vmem:[%s5 + $0x58] sm:$0xff]
      %v620 = vld [vmem:[%s5 + $0x60] sm:$0xff]
      %v621 = vld [vmem:[%s5 + $0x68] sm:$0xff]
      %v622 = vld [vmem:[%s5 + $0x70] sm:$0xff]
      %v623 = vld [vmem:[%s5 + $0x78] sm:$0xff]
      %v624 = vld [vmem:[%s5 + $0x80] sm:$0xff]
      %v625 = vld [vmem:[%s5 + $0x88] sm:$0xff]
      %v626 = vld [vmem:[%s5 + $0x90] sm:$0xff]
      %v627 = vld [vmem:[%s5 + $0x98] sm:$0xff]
      %v628 = vld [vmem:[%s5 + $0xa0] sm:$0xff]
      %v629 = vld [vmem:[%s5 + $0xa8] sm:$0xff]
      %v630 = vld [vmem:[%s5 + $0xb0] sm:$0xff]
      %v631 = vld [vmem:[%s5 + $0xb8] sm:$0xff]
      %v632 = vld [vmem:[%s5 + $0xc0] sm:$0xff]
      %v633 = vld [vmem:[%s5 + $0xc8] sm:$0xff]
      %v634 = vld [vmem:[%s5 + $0xd0] sm:$0xff]
      %v635 = vld [vmem:[%s5 + $0xd8] sm:$0xff]
      %v636 = vld [vmem:[%s5 + $0xe0] sm:$0xff]
      %v637 = vld [vmem:[%s5 + $0xe8] sm:$0xff]
      %v638 = vld [vmem:[%s5 + $0xf0] sm:$0xff]
      %v639 = vld [vmem:[%s5 + $0xf8] sm:$0xff]
      %v640 = vld [vmem:[%s5 + $0x100] sm:$0xff]
      %v641 = vld [vmem:[%s5 + $0x108] sm:$0xff]
      %v642 = vld [vmem:[%s5 + $0x110] sm:$0xff]
      %v643 = vld [vmem:[%s5 + $0x118] sm:$0xff]
      %v644 = vld [vmem:[%s5 + $0x120] sm:$0xff]
      %v645 = vld [vmem:[%s5 + $0x128] sm:$0xff]
      %v646 = vld [vmem:[%s5 + $0x130] sm:$0xff]
      %v647 = vld [vmem:[%s5 + $0x138] sm:$0xff]
      %v648 = vld [vmem:[%s5 + $0x140] sm:$0xff]
      %v649 = vld [vmem:[%s5 + $0x148] sm:$0xff]
      %v650 = vld [vmem:[%s5 + $0x150] sm:$0xff]
      %v651 = vld [vmem:[%s5 + $0x158] sm:$0xff]
      %v652 = vld [vmem:[%s5 + $0x160] sm:$0xff]
      %v653 = vld [vmem:[%s5 + $0x168] sm:$0xff]
      %v654 = vld [vmem:[%s5 + $0x170] sm:$0xff]
      %v655 = vld [vmem:[%s5 + $0x178] sm:$0xff]
      %v656 = vld [vmem:[%s5 + $0x180] sm:$0xff]
      %v657 = vld [vmem:[%s5 + $0x188] sm:$0xff]
      %v658 = vld [vmem:[%s5 + $0x190] sm:$0xff]
      %v659 = vld [vmem:[%s5 + $0x198] sm:$0xff]
      %v660 = vld [vmem:[%s5 + $0x1a0] sm:$0xff]
      %v661 = vld [vmem:[%s5 + $0x1a8] sm:$0xff]
      %v662 = vld [vmem:[%s5 + $0x1b0] sm:$0xff]
      %v663 = vld [vmem:[%s5 + $0x1b8] sm:$0xff]
      %v664 = vld [vmem:[%s5 + $0x1c0] sm:$0xff]
      %v665 = vld [vmem:[%s5 + $0x1c8] sm:$0xff]
      %v666 = vld [vmem:[%s5 + $0x1d0] sm:$0xff]
      %v667 = vld [vmem:[%s5 + $0x1d8] sm:$0xff]
      %v668 = vld [vmem:[%s5 + $0x1e0] sm:$0xff]
      %v669 = vld [vmem:[%s5 + $0x1e8] sm:$0xff]
      %v670 = vld [vmem:[%s6] sm:$0x1]
      %v672 = vlaneseq
      %v673 = vshrl.u32 %v672, 7
      %v674 = vsub.s32 0, %v673
      %v675 = vrot.slane %v670, %v674
      %vm677 = vcmask 916480
      %v679 = vsel %vm677, %v606, 0
      %v682 = vsel %vm677, %v607, 0
      %684 = vmatprep.subr.mxu0 0.0
      %685 = vmatpush1.msra.mxu0 %v608
      %686 = vmatprep.subr.mxu0 0.0
      %687 = vmatpush1.msra.mxu0 %v609
      %688 = vmatprep.subr.mxu0 0.0
      %689 = vmatpush1.msra.mxu0 %v610
      %690 = vmatprep.subr.mxu0 0.0
      %691 = vmatpush1.msra.mxu0 %v611
      %692 = vmatprep.subr.mxu0 0.0
      %693 = vmatpush1.msra.mxu0 %v612
      %694 = vmatprep.subr.mxu0 0.0
      %695 = vmatpush1.msra.mxu0 %v613
      %696 = vmatprep.subr.mxu0 0.0
      %697 = vmatpush1.msra.mxu0 %v614
      %698 = vmatprep.subr.mxu0 0.0
      %699 = vmatpush1.msra.mxu0 %v615
      %700 = vmatprep.subr.mxu0 0.0
      %701 = vmatpush1.msra.mxu0 %v616
      %702 = vmatprep.subr.mxu0 0.0
      %703 = vmatpush1.msra.mxu0 %v617
      %704 = vmatprep.subr.mxu0 0.0
      %705 = vmatpush1.msra.mxu0 %v618
      %706 = vmatprep.subr.mxu0 0.0
      %707 = vmatpush1.msra.mxu0 %v619
      %708 = vmatprep.subr.mxu0 0.0
      %709 = vmatpush1.msra.mxu0 %v620
      %710 = vmatprep.subr.mxu0 0.0
      %711 = vmatpush1.msra.mxu0 %v621
      %712 = vmatprep.subr.mxu0 0.0
      %713 = vmatpush1.msra.mxu0 %v622
      %714 = vmatprep.subr.mxu0 0.0
      %715 = vmatpush1.msra.mxu0 %v623
      %716 = vmatprep.subr.mxu0 0.0
      %717 = vmatpush1.msra.mxu0 %v624
      %718 = vmatprep.subr.mxu0 0.0
      %719 = vmatpush1.msra.mxu0 %v625
      %720 = vmatprep.subr.mxu0 0.0
      %721 = vmatpush1.msra.mxu0 %v626
      %722 = vmatprep.subr.mxu0 0.0
      %723 = vmatpush1.msra.mxu0 %v627
      %724 = vmatprep.subr.mxu0 0.0
      %725 = vmatpush1.msra.mxu0 %v628
      %726 = vmatprep.subr.mxu0 0.0
      %727 = vmatpush1.msra.mxu0 %v629
      %728 = vmatprep.subr.mxu0 0.0
      %729 = vmatpush1.msra.mxu0 %v630
      %730 = vmatprep.subr.mxu0 0.0
      %731 = vmatpush1.msra.mxu0 %v631
      %732 = vmatprep.subr.mxu0 0.0
      %733 = vmatpush1.msra.mxu0 %v632
      %734 = vmatprep.subr.mxu0 0.0
      %735 = vmatpush1.msra.mxu0 %v633
      %736 = vmatprep.subr.mxu0 0.0
      %737 = vmatpush1.msra.mxu0 %v634
      %738 = vmatprep.subr.mxu0 0.0
      %739 = vmatpush1.msra.mxu0 %v635
      %740 = vmatprep.subr.mxu0 0.0
      %741 = vmatpush1.msra.mxu0 %v636
      %742 = vmatprep.subr.mxu0 0.0
      %743 = vmatpush1.msra.mxu0 %v637
      %744 = vmatprep.subr.mxu0 0.0
      %745 = vmatpush1.msra.mxu0 %v638
      %746 = vmatprep.subr.mxu0 0.0
      %747 = vmatpush1.msra.mxu0 %v639
      %748 = vmatprep.mubr.f32.mxu0 %v593
      %749 = vmatmul.mubr.f32.gmra.mrb[0].mxu0 %v536
      %v750 = vpop.f32.mrb[0].mxu0
      %v751 = vadd.f32 %v675, %v750
      %v752 = vpop.f32.mrb[0].mxu0
      %753 = vmatprep.mubr.f32.mxu0 %v594
      %754 = vmatmul.mubr.f32.gmra.mrb[0].mxu0 %v527
      %v755 = vpop.f32.mrb[0].mxu0
      %v756 = vadd.f32 %v675, %v755
      %v757 = vpop.f32.mrb[0].mxu0
      %758 = vdwg.mxu0
      %759 = vmatprep.subr.mxu0 0.0
      %760 = vmatpush1.msra.mxu0 %v640
      %761 = vmatprep.subr.mxu0 0.0
      %762 = vmatpush1.msra.mxu0 %v641
      %763 = vmatprep.subr.mxu0 0.0
      %764 = vmatpush1.msra.mxu0 %v642
      %765 = vmatprep.subr.mxu0 0.0
      %766 = vmatpush1.msra.mxu0 %v643
      %767 = vmatprep.subr.mxu0 0.0
      %768 = vmatpush1.msra.mxu0 %v644
      %769 = vmatprep.subr.mxu0 0.0
      %770 = vmatpush1.msra.mxu0 %v645
      %771 = vmatprep.subr.mxu0 0.0
      %772 = vmatpush1.msra.mxu0 %v646
      %773 = vmatprep.subr.mxu0 0.0
      %774 = vmatpush1.msra.mxu0 %v647
      %775 = vmatprep.subr.mxu0 0.0
      %776 = vmatpush1.msra.mxu0 %v648
      %777 = vmatprep.subr.mxu0 0.0
      %778 = vmatpush1.msra.mxu0 %v649
      %779 = vmatprep.subr.mxu0 0.0
      %780 = vmatpush1.msra.mxu0 %v650
      %781 = vmatprep.subr.mxu0 0.0
      %782 = vmatpush1.msra.mxu0 %v651
      %783 = vmatprep.subr.mxu0 0.0
      %784 = vmatpush1.msra.mxu0 %v652
      %785 = vmatprep.subr.mxu0 0.0
      %786 = vmatpush1.msra.mxu0 %v653
      %787 = vmatprep.subr.mxu0 0.0
      %788 = vmatpush1.msra.mxu0 %v654
      %789 = vmatprep.subr.mxu0 0.0
      %790 = vmatpush1.msra.mxu0 %v655
      %791 = vmatprep.subr.mxu0 0.0
      %792 = vmatpush1.msra.mxu0 %v656
      %793 = vmatprep.subr.mxu0 0.0
      %794 = vmatpush1.msra.mxu0 %v657
      %795 = vmatprep.subr.mxu0 0.0
      %796 = vmatpush1.msra.mxu0 %v658
      %797 = vmatprep.subr.mxu0 0.0
      %798 = vmatpush1.msra.mxu0 %v659
      %799 = vmatprep.subr.mxu0 0.0
      %800 = vmatpush1.msra.mxu0 %v660
      %801 = vmatprep.subr.mxu0 0.0
      %802 = vmatpush1.msra.mxu0 %v661
      %803 = vmatprep.subr.mxu0 0.0
      %804 = vmatpush1.msra.mxu0 %v662
      %805 = vmatprep.subr.mxu0 0.0
      %806 = vmatpush1.msra.mxu0 %v663
      %807 = vmatprep.subr.mxu0 0.0
      %808 = vmatpush1.msra.mxu0 %v664
      %809 = vmatprep.subr.mxu0 0.0
      %810 = vmatpush1.msra.mxu0 %v665
      %811 = vmatprep.subr.mxu0 0.0
      %812 = vmatpush1.msra.mxu0 %v666
      %813 = vmatprep.subr.mxu0 0.0
      %814 = vmatpush1.msra.mxu0 %v667
      %815 = vmatprep.subr.mxu0 0.0
      %816 = vmatpush1.msra.mxu0 %v668
      %817 = vmatprep.subr.mxu0 0.0
      %818 = vmatpush1.msra.mxu0 %v669
      %819 = vmatprep.subr.mxu0 0.0
      %820 = vmatpush1.msra.mxu0 0.0
      %821 = vmatprep.subr.mxu0 0.0
      %822 = vmatpush1.msra.mxu0 0.0
      %823 = vmatprep.mubr.f32.mxu0 %v679
      %824 = vmatmul.mubr.f32.gmra.mrb[0].mxu0 %v595
      %v825 = vpop.f32.mrb[0].mxu0
      %v826 = vadd.f32 %v751, %v825
      %v827 = vpop.f32.mrb[0].mxu0
      %828 = vmatprep.mubr.f32.mxu0 %v682
      %829 = vmatmul.mubr.f32.gmra.mrb[0].mxu0 %v596
      %v830 = vpop.f32.mrb[0].mxu0
      %v831 = vadd.f32 %v756, %v830
      %v832 = vpop.f32.mrb[0].mxu0
      %833 = vdwg.mxu0
      %v834 = vmax.f32 %v826, 0.0
      %v835 = vmax.f32 %v831, 0.0
      %836 = vst [vmem:[%s278] sm:$0xff] %v834
      %837 = vst [vmem:[%s278 + $0x8] sm:$0xff] %v835
      %p838 = scmp.lt.s32.totalorder %s18, 1
      %s839 = scalar_select %p838, %s18, 1
      %s840 = smul.addr %s839, 2
      %s841 = smul.addr %s840, 8
      %s842 = scalar_lea.vmem %s7, %s841
      // Predicated region
      $region49: #{unet_block_forward.1} parent=47 // pred_check
        %p843 = pneg %p188
      $region50: #{unet_block_forward.1} parent=47 // pred_check_branch
        %845 = sbr.rel (%p843) target = $region52
      $region51: #{unet_block_forward.1} parent=47 // pred_region
        _
      $region52: #{unet_block_forward.1} parent=47 // pred_fallthru
        _
    $region48: #{unet_block_forward.1} parent=5 // pred_fallthru
      _
    %p846 = scmp.le.s32.totalorder 2, %s13
    // Predicated region
    $region53: #{unet_block_forward.1} parent=5 // pred_check
      %p847 = pneg %p846
    $region54: #{unet_block_forward.1} parent=5 // pred_check_branch
      %849 = sbr.rel (%p847) target = $region56
    $region55: #{unet_block_forward.1} parent=5 // pred_region
      %s850 = ssub.s32 %s13, 2
      // Predicated region
      $region57: #{unet_block_forward.1} parent=55 // pred_check
        %p851 = pneg %p194
      $region58: #{unet_block_forward.1} parent=55 // pred_check_branch
        %853 = sbr.rel (%p851) target = $region60
      $region59: #{unet_block_forward.1} parent=55 // pred_region
        %p854 = scmp.lt.s32.totalorder %s19, 1
        %s855 = scalar_select %p854, %s19, 1
        %s856 = smul.addr %s855, 2
        %s857 = smul.addr %s856, 8
        %s858 = scalar_lea.vmem %s7, %s857
      $region60: #{unet_block_forward.1} parent=55 // pred_fallthru
        _
    $region56: #{unet_block_forward.1} parent=5 // pred_fallthru
      _
  $region6: #{unet_block_forward.1} parent=0 // loop_footer
    %s17 = sadd.s32 1, %s13
  $region7: #{unet_block_forward.1} parent=0 // loop_footer_branch
    %12 = sbr.rel target = $region3
  $region8: #{unet_block_forward.1} parent=0 // loop_exit
    _

</llo_original>
